<compile_context>
chip_gen: v7x
topology: tpu7x:2x2x1
jax: 0.10.0
libtpu: 0.0.40
codegen_flags: <defaults>
</compile_context>

<pallas_src>
import functools

import jax
import jax.numpy as jnp
from jax.experimental import pallas as pl
from jax.experimental.pallas import tpu as pltpu

HIDDEN_SIZE = 6
INPUT_SIZE = 4
OUTPUT_SIZE = 3      # number of actions (fc3 output size)

SUBLANE = 8          # batch-tile granularity / feature pad width
BLOCK_B = 4096       # batch rows per grid step (multiple of 8)


def _round_up(n, m):
    return ((n + m - 1) // m) * m


def _mlp_softmax_kernel(x_ref, w1_ref, b1_ref, w2_ref, b2_ref, w3_ref, b3_ref,
                        o_ref):
    """out = softmax(fc3(relu(fc2(relu(fc1(x)))))) along the lane axis."""
    cdt = w1_ref.dtype                      # compute dtype (f32 or bf16)
    x = x_ref[...]
    if x.dtype != cdt:
        x = x.astype(cdt)

    # fc1 + ReLU (MXU, f32 accumulate; biases stay f32)
    h = jnp.dot(x, w1_ref[...], preferred_element_type=jnp.float32) + b1_ref[...]
    h = jnp.maximum(h, 0.0).astype(cdt)

    # fc2 + ReLU
    h = jnp.dot(h, w2_ref[...], preferred_element_type=jnp.float32) + b2_ref[...]
    h = jnp.maximum(h, 0.0).astype(cdt)

    # fc3 logits; drop the zero-padded logit lanes before the softmax so no
    # masking is needed.
    logits = jnp.dot(h, w3_ref[...], preferred_element_type=jnp.float32) + b3_ref[...]
    logits = logits[:, :o_ref.shape[-1]]

    # Numerically-stable softmax along dim=1, exact divide.
    m = jnp.max(logits, axis=-1, keepdims=True)
    e = jnp.exp(logits - m)
    denom = jnp.sum(e, axis=-1, keepdims=True)
    o_ref[...] = (e / denom).astype(o_ref.dtype)


def prepare_params(params, *, output_size=OUTPUT_SIZE, dtype=jnp.float32):
    """Pad torch-layout params ONCE to narrow, 8-lane-wide tiles.

    Weights come in as (out, in); stored transposed as (in, pad) with zero
    padding.  `dtype=jnp.bfloat16` enables the bf16 MXU/DMA path (recommended
    for v5e/v6e); biases remain f32.
    """
    w1, b1, w2, b2, w3, b3 = params
    hid, in_dim = w1.shape
    fpad = _round_up(max(hid, output_size), SUBLANE)   # 6/3 -> 8

    w1_p = jnp.zeros((in_dim, fpad), dtype).at[:, :hid].set(w1.T.astype(dtype))
    b1_p = jnp.zeros((1, fpad), jnp.float32).at[0, :hid].set(b1)
    w2_p = jnp.zeros((fpad, fpad), dtype).at[:hid, :hid].set(w2.T.astype(dtype))
    b2_p = jnp.zeros((1, fpad), jnp.float32).at[0, :hid].set(b2)
    w3_p = jnp.zeros((fpad, fpad), dtype).at[:hid, :output_size].set(w3.T.astype(dtype))
    b3_p = jnp.zeros((1, fpad), jnp.float32).at[0, :output_size].set(b3)
    return (w1_p, b1_p, w2_p, b2_p, w3_p, b3_p)


@functools.partial(jax.jit, static_argnames=("output_size", "block_b"))
def state_state_to_action_forward(x, padded_params, *, output_size=OUTPUT_SIZE,
                                  block_b=BLOCK_B):
    """x: (B, input_size). padded_params: output of prepare_params.

    Returns (B, output_size) softmax probabilities (float32).
    """
    w1_p, b1_p, w2_p, b2_p, w3_p, b3_p = padded_params
    b, in_dim = x.shape

    cdt = w1_p.dtype
    if x.dtype != cdt:                      # bf16 path: halve x HBM bytes too
        x = x.astype(cdt)

    # Batch tile: full array when it fits in one block (no padding at all),
    # otherwise BLOCK_B rows/step with a partial trailing block via cdiv.
    if b <= block_b:
        bb = b
        grid = (1,)
    else:
        assert block_b % SUBLANE == 0
        bb = block_b
        grid = (pl.cdiv(b, bb),)

    def resident(shape):                    # weights/biases: same block every step
        return pl.BlockSpec(shape, lambda i: (0, 0))

    out = pl.pallas_call(
        _mlp_softmax_kernel,
        out_shape=jax.ShapeDtypeStruct((b, output_size), jnp.float32),
        grid_spec=pltpu.PrefetchScalarGridSpec(
            num_scalar_prefetch=0,
            grid=grid,
            in_specs=[
                pl.BlockSpec((bb, in_dim), lambda i: (i, 0)),   # x tile
                resident(w1_p.shape),                            # w1
                resident(b1_p.shape),                            # b1
                resident(w2_p.shape),                            # w2
                resident(b2_p.shape),                            # b2
                resident(w3_p.shape),                            # w3
                resident(b3_p.shape),                            # b3
            ],
            out_specs=pl.BlockSpec((bb, output_size), lambda i: (i, 0)),
        ),
        compiler_params=pltpu.CompilerParams(
            dimension_semantics=("parallel",)),
    )(x, w1_p, b1_p, w2_p, b2_p, w3_p, b3_p)

    return out


def init_params(key, input_size, hidden_size, output_size):
    """Deterministic torch-style (uniform +-1/sqrt(fan_in)) init. W is (out, in)."""
    keys = jax.random.split(key, 6)

    def lin(kw, kb, fan_in, fan_out):
        bound = 1.0 / jnp.sqrt(float(fan_in))
        w = jax.random.uniform(kw, (fan_out, fan_in), jnp.float32, -bound, bound)
        bvec = jax.random.uniform(kb, (fan_out,), jnp.float32, -bound, bound)
        return w, bvec

    w1, b1 = lin(keys[0], keys[1], input_size, hidden_size)
    w2, b2 = lin(keys[2], keys[3], hidden_size, hidden_size)
    w3, b3 = lin(keys[4], keys[5], hidden_size, output_size)
    return (w1, b1, w2, b2, w3, b3)


def reference_forward(x, params):
    """Pure-JAX reference matching the PyTorch forward exactly."""
    w1, b1, w2, b2, w3, b3 = params
    h = jnp.maximum(x @ w1.T + b1, 0.0)
    h = jnp.maximum(h @ w2.T + b2, 0.0)
    logits = h @ w3.T + b3
    return jax.nn.softmax(logits, axis=1)


if __name__ == "__main__":
    key = jax.random.PRNGKey(0)
    k_params, k_x, k_x2 = jax.random.split(key, 3)

    params = init_params(k_params, INPUT_SIZE, HIDDEN_SIZE, OUTPUT_SIZE)
    padded_params = prepare_params(params)                    # pad ONCE (f32 path)

    # Small batch: single full-array block, no padding anywhere.
    x = jax.random.normal(k_x, (2, INPUT_SIZE), jnp.float32)
    out = state_state_to_action_forward(x, padded_params)
    jax.block_until_ready(out)

    ref = reference_forward(x, params)
    assert out.shape == (2, OUTPUT_SIZE)
    assert jnp.allclose(out, ref, atol=1e-3, rtol=1e-3), (out, ref)
    assert jnp.allclose(jnp.sum(out, axis=1), 1.0, atol=1e-5)

    # Non-multiple-of-8 batch with a 2-step grid and a partial trailing block.
    x2 = jax.random.normal(k_x2, (13, INPUT_SIZE), jnp.float32)
    out2 = state_state_to_action_forward(x2, padded_params, block_b=8)
    jax.block_until_ready(out2)
    ref2 = reference_forward(x2, params)
    assert out2.shape == (13, OUTPUT_SIZE)
    assert jnp.allclose(out2, ref2, atol=1e-3, rtol=1e-3), (out2, ref2)
    assert jnp.allclose(jnp.sum(out2, axis=1), 1.0, atol=1e-5)

    print("KERNEL_OK")
</pallas_src>

<mosaic_0001>
module attributes {stable_mosaic.version = 11 : i64} {
  func.func @_mlp_softmax_kernel(%arg0: i32, %arg1: memref<2x4xf32, #tpu.memory_space<vmem>>, %arg2: memref<4x8xf32, #tpu.memory_space<vmem>>, %arg3: memref<1x8xf32, #tpu.memory_space<vmem>>, %arg4: memref<8x8xf32, #tpu.memory_space<vmem>>, %arg5: memref<1x8xf32, #tpu.memory_space<vmem>>, %arg6: memref<8x8xf32, #tpu.memory_space<vmem>>, %arg7: memref<1x8xf32, #tpu.memory_space<vmem>>, %arg8: memref<2x3xf32, #tpu.memory_space<vmem>>) attributes {dimension_semantics = [#tpu.dimension_semantics<parallel>], iteration_bounds = array<i64: 1>, scalar_prefetch = 0 : i64, scratch_operands = 0 : i64, tpu.core_type = #tpu.core_type<tc>, window_params = [{transform_indices = @transform_0, window_bounds = array<i64: 2, 4>}, {pipeline_mode = #tpu.pipeline_mode<synchronous>, transform_indices = @transform_1, window_bounds = array<i64: 4, 8>}, {pipeline_mode = #tpu.pipeline_mode<synchronous>, transform_indices = @transform_2, window_bounds = array<i64: 1, 8>}, {pipeline_mode = #tpu.pipeline_mode<synchronous>, transform_indices = @transform_3, window_bounds = array<i64: 8, 8>}, {pipeline_mode = #tpu.pipeline_mode<synchronous>, transform_indices = @transform_4, window_bounds = array<i64: 1, 8>}, {pipeline_mode = #tpu.pipeline_mode<synchronous>, transform_indices = @transform_5, window_bounds = array<i64: 8, 8>}, {pipeline_mode = #tpu.pipeline_mode<synchronous>, transform_indices = @transform_6, window_bounds = array<i64: 1, 8>}, {transform_indices = @transform_7, window_bounds = array<i64: 2, 3>}]} {
    %c0 = arith.constant 0 : index
    %c0_0 = arith.constant 0 : index
    %0 = vector.load %arg1[%c0, %c0_0] : memref<2x4xf32, #tpu.memory_space<vmem>>, vector<2x4xf32>
    %c0_1 = arith.constant 0 : index
    %c0_2 = arith.constant 0 : index
    %1 = vector.load %arg2[%c0_1, %c0_2] : memref<4x8xf32, #tpu.memory_space<vmem>>, vector<4x8xf32>
    %cst = arith.constant dense<0.000000e+00> : vector<2x8xf32>
    %2 = tpu.matmul %0, %1, %cst {dimension_numbers = #tpu.dot_dimension_numbers<[1], [0], [0], [1], [0, 0, 1, 1], [], []>} : vector<2x4xf32>, vector<4x8xf32>, vector<2x8xf32> -> vector<2x8xf32>
    %c0_3 = arith.constant 0 : index
    %c0_4 = arith.constant 0 : index
    %3 = vector.load %arg3[%c0_3, %c0_4] : memref<1x8xf32, #tpu.memory_space<vmem>>, vector<1x8xf32>
    %4 = vector.broadcast %3 : vector<1x8xf32> to vector<2x8xf32>
    %5 = arith.addf %2, %4 : vector<2x8xf32>
    %cst_5 = arith.constant 0.000000e+00 : f32
    %6 = vector.broadcast %cst_5 : f32 to vector<2x8xf32>
    %7 = arith.maximumf %5, %6 : vector<2x8xf32>
    %c0_6 = arith.constant 0 : index
    %c0_7 = arith.constant 0 : index
    %8 = vector.load %arg4[%c0_6, %c0_7] : memref<8x8xf32, #tpu.memory_space<vmem>>, vector<8x8xf32>
    %cst_8 = arith.constant dense<0.000000e+00> : vector<2x8xf32>
    %9 = tpu.matmul %7, %8, %cst_8 {dimension_numbers = #tpu.dot_dimension_numbers<[1], [0], [0], [1], [0, 0, 1, 1], [], []>} : vector<2x8xf32>, vector<8x8xf32>, vector<2x8xf32> -> vector<2x8xf32>
    %c0_9 = arith.constant 0 : index
    %c0_10 = arith.constant 0 : index
    %10 = vector.load %arg5[%c0_9, %c0_10] : memref<1x8xf32, #tpu.memory_space<vmem>>, vector<1x8xf32>
    %11 = vector.broadcast %10 : vector<1x8xf32> to vector<2x8xf32>
    %12 = arith.addf %9, %11 : vector<2x8xf32>
    %cst_11 = arith.constant 0.000000e+00 : f32
    %13 = vector.broadcast %cst_11 : f32 to vector<2x8xf32>
    %14 = arith.maximumf %12, %13 : vector<2x8xf32>
    %c0_12 = arith.constant 0 : index
    %c0_13 = arith.constant 0 : index
    %15 = vector.load %arg6[%c0_12, %c0_13] : memref<8x8xf32, #tpu.memory_space<vmem>>, vector<8x8xf32>
    %cst_14 = arith.constant dense<0.000000e+00> : vector<2x8xf32>
    %16 = tpu.matmul %14, %15, %cst_14 {dimension_numbers = #tpu.dot_dimension_numbers<[1], [0], [0], [1], [0, 0, 1, 1], [], []>} : vector<2x8xf32>, vector<8x8xf32>, vector<2x8xf32> -> vector<2x8xf32>
    %c0_15 = arith.constant 0 : index
    %c0_16 = arith.constant 0 : index
    %17 = vector.load %arg7[%c0_15, %c0_16] : memref<1x8xf32, #tpu.memory_space<vmem>>, vector<1x8xf32>
    %18 = vector.broadcast %17 : vector<1x8xf32> to vector<2x8xf32>
    %19 = arith.addf %16, %18 : vector<2x8xf32>
    %20 = vector.extract_strided_slice %19 {offsets = [0, 0], sizes = [2, 3], strides = [1, 1]} : vector<2x8xf32> to vector<2x3xf32>
    %cst_17 = arith.constant dense<0xFF800000> : vector<2xf32>
    %21 = vector.multi_reduction <maximumf>, %20, %cst_17 [1] : vector<2x3xf32> to vector<2xf32>
    %22 = vector.shape_cast %21 : vector<2xf32> to vector<2x1xf32>
    %23 = vector.broadcast %22 : vector<2x1xf32> to vector<2x3xf32>
    %24 = arith.subf %20, %23 : vector<2x3xf32>
    %25 = math.exp %24 : vector<2x3xf32>
    %cst_18 = arith.constant dense<0.000000e+00> : vector<2xf32>
    %26 = vector.multi_reduction <add>, %25, %cst_18 [1] : vector<2x3xf32> to vector<2xf32>
    %27 = vector.shape_cast %26 : vector<2xf32> to vector<2x1xf32>
    %28 = vector.broadcast %27 : vector<2x1xf32> to vector<2x3xf32>
    %29 = arith.divf %25, %28 : vector<2x3xf32>
    %c0_19 = arith.constant 0 : index
    %c0_20 = arith.constant 0 : index
    %30 = vector.load %arg8[%c0_19, %c0_20] : memref<2x3xf32, #tpu.memory_space<vmem>>, vector<2x3xf32>
    tpu.vector_store %arg8[%c0_19, %c0_20], %29 {strides = array<i32>} : memref<2x3xf32, #tpu.memory_space<vmem>>, vector<2x3xf32>,
    return
  }
  func.func @transform_0(%arg0: i32) -> (i32, i32) {
    %c0_i32 = arith.constant 0 : i32
    %c0_i32_0 = arith.constant 0 : i32
    return %arg0, %c0_i32 : i32, i32
  }
  func.func @transform_1(%arg0: i32) -> (i32, i32) {
    %c0_i32 = arith.constant 0 : i32
    %c0_i32_0 = arith.constant 0 : i32
    %c0_i32_1 = arith.constant 0 : i32
    return %c0_i32, %c0_i32_0 : i32, i32
  }
  func.func @transform_2(%arg0: i32) -> (i32, i32) {
    %c0_i32 = arith.constant 0 : i32
    %c0_i32_0 = arith.constant 0 : i32
    %c0_i32_1 = arith.constant 0 : i32
    return %c0_i32, %c0_i32_0 : i32, i32
  }
  func.func @transform_3(%arg0: i32) -> (i32, i32) {
    %c0_i32 = arith.constant 0 : i32
    %c0_i32_0 = arith.constant 0 : i32
    %c0_i32_1 = arith.constant 0 : i32
    return %c0_i32, %c0_i32_0 : i32, i32
  }
  func.func @transform_4(%arg0: i32) -> (i32, i32) {
    %c0_i32 = arith.constant 0 : i32
    %c0_i32_0 = arith.constant 0 : i32
    %c0_i32_1 = arith.constant 0 : i32
    return %c0_i32, %c0_i32_0 : i32, i32
  }
  func.func @transform_5(%arg0: i32) -> (i32, i32) {
    %c0_i32 = arith.constant 0 : i32
    %c0_i32_0 = arith.constant 0 : i32
    %c0_i32_1 = arith.constant 0 : i32
    return %c0_i32, %c0_i32_0 : i32, i32
  }
  func.func @transform_6(%arg0: i32) -> (i32, i32) {
    %c0_i32 = arith.constant 0 : i32
    %c0_i32_0 = arith.constant 0 : i32
    %c0_i32_1 = arith.constant 0 : i32
    return %c0_i32, %c0_i32_0 : i32, i32
  }
  func.func @transform_7(%arg0: i32) -> (i32, i32) {
    %c0_i32 = arith.constant 0 : i32
    %c0_i32_0 = arith.constant 0 : i32
    return %arg0, %c0_i32 : i32, i32
  }
}

</mosaic_0001>

<llo_original>
// kernel: state_state_to_action_forward.1
$region0: #{state_state_to_action_forward.1}
  #allocation0 [shape = 'u32[]', space=smem, size = 0x4, offset = 0x4, fixed_abs, tag = 'smem constant byte address 0x4 - core index']
  #allocation1 [shape = 'u32[144,128]{1,0:T(1,128)}', space=vmem, size = 0x12000, scoped, tag = 'internal scratch']
  %s0 = inlined_call_operand.hbm [shape: f32[2,4], index: 0, kind: input, shape index: {}]
  %s1 = inlined_call_operand.hbm [shape: f32[4,8], index: 1, kind: input, shape index: {}]
  %s2 = inlined_call_operand.vmem [shape: f32[1,8], index: 2, kind: input, shape index: {}]
  %s3 = inlined_call_operand.vmem [shape: f32[8,8], index: 3, kind: input, shape index: {}]
  %s4 = inlined_call_operand.vmem [shape: f32[1,8], index: 4, kind: input, shape index: {}]
  %s5 = inlined_call_operand.vmem [shape: f32[8,8], index: 5, kind: input, shape index: {}]
  %s6 = inlined_call_operand.vmem [shape: f32[1,8], index: 6, kind: input, shape index: {}]
  %s7 = inlined_call_operand.hbm [shape: f32[2,3], index: 7, kind: output, shape index: {}]
  %s8 = sld [smem:[#allocation0]]
  $region46: #{state_state_to_action_forward.1} parent=0
    _
  %s10 = ssub.s32 1, %s8
  %s11 = scalar_select 0, %s10, %s8
  $region1: #{state_state_to_action_forward.1} parent=0
    #allocation2 [shape = 'u8[1024]{0}', space=vmem, size = 0x400, scoped, tag = 'input window, operand 0, single buffered']
    #allocation3 [shape = 's32[1]{0}', space=sflag, size = 0x4, scoped, tag = 'scoped memory for state_state_to_action_forward.1']
    #allocation4 [shape = 's32[1]{0}', space=sflag, size = 0x4, scoped, tag = 'scoped memory for state_state_to_action_forward.1']
    #allocation5 [shape = 'u8[2048]{0}', space=vmem, size = 0x800, scoped, tag = 'input window, operand 1, single buffered']
    #allocation6 [shape = 's32[1]{0}', space=sflag, size = 0x4, scoped, tag = 'scoped memory for state_state_to_action_forward.1']
    #allocation7 [shape = 'u8[1024]{0}', space=vmem, size = 0x400, scoped, tag = 'output window, operand 0, single buffered']
    %12 = vsyncpa [#allocation3], 0
    %13 = vsyncpa [#allocation6], 0
    %14 = vsyncpa [#allocation4], 0
    // Predicated region
    $region2: #{state_state_to_action_forward.1} parent=1 // pred_check
      _
    $region3: #{state_state_to_action_forward.1} parent=1 // pred_check_branch
      %16 = sbr.rel (0) target = $region5
    $region4: #{state_state_to_action_forward.1} parent=1 // pred_region
      %s18 = ssub.s32 32, 32
      %19 = vsyncadd [#allocation3], %s18
      %s21 = sshll.u32 [#allocation2], 4
      %s22 = int_to_ptr.vmem [resolvable:$true] %s21
      %24 = dma.hbm_to_vmem [thread:$0]  %s0, 32, %s22, [#allocation3]
    $region5: #{state_state_to_action_forward.1} parent=1 // pred_fallthru
      _
    // Predicated region
    $region6: #{state_state_to_action_forward.1} parent=1 // pred_check
      _
    $region7: #{state_state_to_action_forward.1} parent=1 // pred_check_branch
      %26 = sbr.rel (0) target = $region9
    $region8: #{state_state_to_action_forward.1} parent=1 // pred_region
      %s28 = ssub.s32 64, 64
      %29 = vsyncadd [#allocation6], %s28
      %s31 = sshll.u32 [#allocation5], 4
      %s32 = int_to_ptr.vmem [resolvable:$true] %s31
      %34 = dma.hbm_to_vmem [thread:$0]  %s1, 64, %s32, [#allocation6]
    $region9: #{state_state_to_action_forward.1} parent=1 // pred_fallthru
      _
    // Predicated region
    $region10: #{state_state_to_action_forward.1} parent=1 // pred_check
      _
    $region11: #{state_state_to_action_forward.1} parent=1 // pred_check_branch
      %36 = sbr.rel (0) target = $region13
    $region12: #{state_state_to_action_forward.1} parent=1 // pred_region
      _
    $region13: #{state_state_to_action_forward.1} parent=1 // pred_fallthru
      _
    // Predicated region
    $region14: #{state_state_to_action_forward.1} parent=1 // pred_check
      _
    $region15: #{state_state_to_action_forward.1} parent=1 // pred_check_branch
      %38 = sbr.rel (0) target = $region17
    $region16: #{state_state_to_action_forward.1} parent=1 // pred_region
      _
    $region17: #{state_state_to_action_forward.1} parent=1 // pred_fallthru
      _
    // Predicated region
    $region18: #{state_state_to_action_forward.1} parent=1 // pred_check
      _
    $region19: #{state_state_to_action_forward.1} parent=1 // pred_check_branch
      %40 = sbr.rel (0) target = $region21
    $region20: #{state_state_to_action_forward.1} parent=1 // pred_region
      _
    $region21: #{state_state_to_action_forward.1} parent=1 // pred_fallthru
      _
    // Predicated region
    $region22: #{state_state_to_action_forward.1} parent=1 // pred_check
      _
    $region23: #{state_state_to_action_forward.1} parent=1 // pred_check_branch
      %42 = sbr.rel (0) target = $region25
    $region24: #{state_state_to_action_forward.1} parent=1 // pred_region
      _
    $region25: #{state_state_to_action_forward.1} parent=1 // pred_fallthru
      _
    // Predicated region
    $region26: #{state_state_to_action_forward.1} parent=1 // pred_check
      _
    $region27: #{state_state_to_action_forward.1} parent=1 // pred_check_branch
      %44 = sbr.rel (0) target = $region29
    $region28: #{state_state_to_action_forward.1} parent=1 // pred_region
      _
    $region29: #{state_state_to_action_forward.1} parent=1 // pred_fallthru
      _
    // Predicated region
    $region30: #{state_state_to_action_forward.1} parent=1 // pred_check
      _
    $region31: #{state_state_to_action_forward.1} parent=1 // pred_check_branch
      %46 = sbr.rel (0) target = $region33
    $region32: #{state_state_to_action_forward.1} parent=1 // pred_region
      %47 = dma.done [#allocation3], 32
    $region33: #{state_state_to_action_forward.1} parent=1 // pred_fallthru
      _
    // Predicated region
    $region34: #{state_state_to_action_forward.1} parent=1 // pred_check
      _
    $region35: #{state_state_to_action_forward.1} parent=1 // pred_check_branch
      %49 = sbr.rel (0) target = $region37
    $region36: #{state_state_to_action_forward.1} parent=1 // pred_region
      %50 = dma.done [#allocation6], 64
    $region37: #{state_state_to_action_forward.1} parent=1 // pred_fallthru
      _
    %v51 = vld [vmem:[#allocation2] sm:$0x3]
    %v52 = vld [vmem:[#allocation5] sm:$0xf]
    %v53 = vld [vmem:[%s2] sm:$0x1]
    %v55 = vlaneseq
    %v56 = vshrl.u32 %v55, 7
    %v57 = vsub.s32 0, %v56
    %v58 = vrot.slane %v53, %v57
    %vm60 = vcmask 31744
    %v62 = vsel %vm60, %v51, 0
    %vm64 = vcmask 1043456
    %v66 = vsel %vm64, %v52, 0
    %68 = vmatprep.subr.mxu0 0.0
    %69 = vmatpush1.msra.mxu0 %v66
    %70 = vmatprep.subr.mxu0 0.0
    %71 = vmatpush1.msra.mxu0 0.0
    %72 = vmatprep.subr.mxu0 0.0
    %73 = vmatpush1.msra.mxu0 0.0
    %74 = vmatprep.subr.mxu0 0.0
    %75 = vmatpush1.msra.mxu0 0.0
    %76 = vmatprep.subr.mxu0 0.0
    %77 = vmatpush1.msra.mxu0 0.0
    %78 = vmatprep.subr.mxu0 0.0
    %79 = vmatpush1.msra.mxu0 0.0
    %80 = vmatprep.subr.mxu0 0.0
    %81 = vmatpush1.msra.mxu0 0.0
    %82 = vmatprep.subr.mxu0 0.0
    %83 = vmatpush1.msra.mxu0 0.0
    %84 = vmatprep.subr.mxu0 0.0
    %85 = vmatpush1.msra.mxu0 0.0
    %86 = vmatprep.subr.mxu0 0.0
    %87 = vmatpush1.msra.mxu0 0.0
    %88 = vmatprep.subr.mxu0 0.0
    %89 = vmatpush1.msra.mxu0 0.0
    %90 = vmatprep.subr.mxu0 0.0
    %91 = vmatpush1.msra.mxu0 0.0
    %92 = vmatprep.subr.mxu0 0.0
    %93 = vmatpush1.msra.mxu0 0.0
    %94 = vmatprep.subr.mxu0 0.0
    %95 = vmatpush1.msra.mxu0 0.0
    %96 = vmatprep.subr.mxu0 0.0
    %97 = vmatpush1.msra.mxu0 0.0
    %98 = vmatprep.subr.mxu0 0.0
    %99 = vmatpush1.msra.mxu0 0.0
    %100 = vmatprep.subr.mxu0 0.0
    %101 = vmatpush1.msra.mxu0 0.0
    %102 = vmatprep.subr.mxu0 0.0
    %103 = vmatpush1.msra.mxu0 0.0
    %104 = vmatprep.subr.mxu0 0.0
    %105 = vmatpush1.msra.mxu0 0.0
    %106 = vmatprep.subr.mxu0 0.0
    %107 = vmatpush1.msra.mxu0 0.0
    %108 = vmatprep.subr.mxu0 0.0
    %109 = vmatpush1.msra.mxu0 0.0
    %110 = vmatprep.subr.mxu0 0.0
    %111 = vmatpush1.msra.mxu0 0.0
    %112 = vmatprep.subr.mxu0 0.0
    %113 = vmatpush1.msra.mxu0 0.0
    %114 = vmatprep.subr.mxu0 0.0
    %115 = vmatpush1.msra.mxu0 0.0
    %116 = vmatprep.subr.mxu0 0.0
    %117 = vmatpush1.msra.mxu0 0.0
    %118 = vmatprep.subr.mxu0 0.0
    %119 = vmatpush1.msra.mxu0 0.0
    %120 = vmatprep.subr.mxu0 0.0
    %121 = vmatpush1.msra.mxu0 0.0
    %122 = vmatprep.subr.mxu0 0.0
    %123 = vmatpush1.msra.mxu0 0.0
    %124 = vmatprep.subr.mxu0 0.0
    %125 = vmatpush1.msra.mxu0 0.0
    %126 = vmatprep.subr.mxu0 0.0
    %127 = vmatpush1.msra.mxu0 0.0
    %128 = vmatprep.subr.mxu0 0.0
    %129 = vmatpush1.msra.mxu0 0.0
    %130 = vmatprep.subr.mxu0 0.0
    %131 = vmatpush1.msra.mxu0 0.0
    %132 = vmatprep.mubr.f32.mxu0 0.0
    %133 = vmatmul.mubr.f32.gmra.mrb[0].mxu0 %v62
    %v134 = vpop.f32.mrb[0].mxu0
    %v135 = vadd.f32 %v58, %v134
    %v136 = vpop.f32.mrb[0].mxu0
    %137 = vdwg.mxu0
    %v138 = vmax.f32 %v135, 0.0
    %v139 = vld [vmem:[%s3] sm:$0xff]
    %v140 = vld [vmem:[%s4] sm:$0x1]
    %v142 = vlaneseq
    %v143 = vshrl.u32 %v142, 7
    %v144 = vsub.s32 0, %v143
    %v145 = vrot.slane %v140, %v144
    %vm147 = vcmask 64512
    %v149 = vsel %vm147, %v138, 0
    %151 = vmatprep.subr.mxu0 0.0
    %152 = vmatpush1.msra.mxu0 %v139
    %153 = vmatprep.subr.mxu0 0.0
    %154 = vmatpush1.msra.mxu0 0.0
    %155 = vmatprep.subr.mxu0 0.0
    %156 = vmatpush1.msra.mxu0 0.0
    %157 = vmatprep.subr.mxu0 0.0
    %158 = vmatpush1.msra.mxu0 0.0
    %159 = vmatprep.subr.mxu0 0.0
    %160 = vmatpush1.msra.mxu0 0.0
    %161 = vmatprep.subr.mxu0 0.0
    %162 = vmatpush1.msra.mxu0 0.0
    %163 = vmatprep.subr.mxu0 0.0
    %164 = vmatpush1.msra.mxu0 0.0
    %165 = vmatprep.subr.mxu0 0.0
    %166 = vmatpush1.msra.mxu0 0.0
    %167 = vmatprep.subr.mxu0 0.0
    %168 = vmatpush1.msra.mxu0 0.0
    %169 = vmatprep.subr.mxu0 0.0
    %170 = vmatpush1.msra.mxu0 0.0
    %171 = vmatprep.subr.mxu0 0.0
    %172 = vmatpush1.msra.mxu0 0.0
    %173 = vmatprep.subr.mxu0 0.0
    %174 = vmatpush1.msra.mxu0 0.0
    %175 = vmatprep.subr.mxu0 0.0
    %176 = vmatpush1.msra.mxu0 0.0
    %177 = vmatprep.subr.mxu0 0.0
    %178 = vmatpush1.msra.mxu0 0.0
    %179 = vmatprep.subr.mxu0 0.0
    %180 = vmatpush1.msra.mxu0 0.0
    %181 = vmatprep.subr.mxu0 0.0
    %182 = vmatpush1.msra.mxu0 0.0
    %183 = vmatprep.subr.mxu0 0.0
    %184 = vmatpush1.msra.mxu0 0.0
    %185 = vmatprep.subr.mxu0 0.0
    %186 = vmatpush1.msra.mxu0 0.0
    %187 = vmatprep.subr.mxu0 0.0
    %188 = vmatpush1.msra.mxu0 0.0
    %189 = vmatprep.subr.mxu0 0.0
    %190 = vmatpush1.msra.mxu0 0.0
    %191 = vmatprep.subr.mxu0 0.0
    %192 = vmatpush1.msra.mxu0 0.0
    %193 = vmatprep.subr.mxu0 0.0
    %194 = vmatpush1.msra.mxu0 0.0
    %195 = vmatprep.subr.mxu0 0.0
    %196 = vmatpush1.msra.mxu0 0.0
    %197 = vmatprep.subr.mxu0 0.0
    %198 = vmatpush1.msra.mxu0 0.0
    %199 = vmatprep.subr.mxu0 0.0
    %200 = vmatpush1.msra.mxu0 0.0
    %201 = vmatprep.subr.mxu0 0.0
    %202 = vmatpush1.msra.mxu0 0.0
    %203 = vmatprep.subr.mxu0 0.0
    %204 = vmatpush1.msra.mxu0 0.0
    %205 = vmatprep.subr.mxu0 0.0
    %206 = vmatpush1.msra.mxu0 0.0
    %207 = vmatprep.subr.mxu0 0.0
    %208 = vmatpush1.msra.mxu0 0.0
    %209 = vmatprep.subr.mxu0 0.0
    %210 = vmatpush1.msra.mxu0 0.0
    %211 = vmatprep.subr.mxu0 0.0
    %212 = vmatpush1.msra.mxu0 0.0
    %213 = vmatprep.subr.mxu0 0.0
    %214 = vmatpush1.msra.mxu0 0.0
    %215 = vmatprep.mubr.f32.mxu0 0.0
    %216 = vmatmul.mubr.f32.gmra.mrb[0].mxu0 %v149
    %v217 = vpop.f32.mrb[0].mxu0
    %v218 = vadd.f32 %v145, %v217
    %v219 = vpop.f32.mrb[0].mxu0
    %220 = vdwg.mxu0
    %v221 = vmax.f32 %v218, 0.0
    %v222 = vld [vmem:[%s5] sm:$0xff]
    %v223 = vld [vmem:[%s6] sm:$0x1]
    %v225 = vlaneseq
    %v226 = vshrl.u32 %v225, 7
    %v227 = vsub.s32 0, %v226
    %v228 = vrot.slane %v223, %v227
    %v231 = vsel %vm147, %v221, 0
    %233 = vmatprep.subr.mxu0 0.0
    %234 = vmatpush1.msra.mxu0 %v222
    %235 = vmatprep.subr.mxu0 0.0
    %236 = vmatpush1.msra.mxu0 0.0
    %237 = vmatprep.subr.mxu0 0.0
    %238 = vmatpush1.msra.mxu0 0.0
    %239 = vmatprep.subr.mxu0 0.0
    %240 = vmatpush1.msra.mxu0 0.0
    %241 = vmatprep.subr.mxu0 0.0
    %242 = vmatpush1.msra.mxu0 0.0
    %243 = vmatprep.subr.mxu0 0.0
    %244 = vmatpush1.msra.mxu0 0.0
    %245 = vmatprep.subr.mxu0 0.0
    %246 = vmatpush1.msra.mxu0 0.0
    %247 = vmatprep.subr.mxu0 0.0
    %248 = vmatpush1.msra.mxu0 0.0
    %249 = vmatprep.subr.mxu0 0.0
    %250 = vmatpush1.msra.mxu0 0.0
    %251 = vmatprep.subr.mxu0 0.0
    %252 = vmatpush1.msra.mxu0 0.0
    %253 = vmatprep.subr.mxu0 0.0
    %254 = vmatpush1.msra.mxu0 0.0
    %255 = vmatprep.subr.mxu0 0.0
    %256 = vmatpush1.msra.mxu0 0.0
    %257 = vmatprep.subr.mxu0 0.0
    %258 = vmatpush1.msra.mxu0 0.0
    %259 = vmatprep.subr.mxu0 0.0
    %260 = vmatpush1.msra.mxu0 0.0
    %261 = vmatprep.subr.mxu0 0.0
    %262 = vmatpush1.msra.mxu0 0.0
    %263 = vmatprep.subr.mxu0 0.0
    %264 = vmatpush1.msra.mxu0 0.0
    %265 = vmatprep.subr.mxu0 0.0
    %266 = vmatpush1.msra.mxu0 0.0
    %267 = vmatprep.subr.mxu0 0.0
    %268 = vmatpush1.msra.mxu0 0.0
    %269 = vmatprep.subr.mxu0 0.0
    %270 = vmatpush1.msra.mxu0 0.0
    %271 = vmatprep.subr.mxu0 0.0
    %272 = vmatpush1.msra.mxu0 0.0
    %273 = vmatprep.subr.mxu0 0.0
    %274 = vmatpush1.msra.mxu0 0.0
    %275 = vmatprep.subr.mxu0 0.0
    %276 = vmatpush1.msra.mxu0 0.0
    %277 = vmatprep.subr.mxu0 0.0
    %278 = vmatpush1.msra.mxu0 0.0
    %279 = vmatprep.subr.mxu0 0.0
    %280 = vmatpush1.msra.mxu0 0.0
    %281 = vmatprep.subr.mxu0 0.0
    %282 = vmatpush1.msra.mxu0 0.0
    %283 = vmatprep.subr.mxu0 0.0
    %284 = vmatpush1.msra.mxu0 0.0
    %285 = vmatprep.subr.mxu0 0.0
    %286 = vmatpush1.msra.mxu0 0.0
    %287 = vmatprep.subr.mxu0 0.0
    %288 = vmatpush1.msra.mxu0 0.0
    %289 = vmatprep.subr.mxu0 0.0
    %290 = vmatpush1.msra.mxu0 0.0
    %291 = vmatprep.subr.mxu0 0.0
    %292 = vmatpush1.msra.mxu0 0.0
    %293 = vmatprep.subr.mxu0 0.0
    %294 = vmatpush1.msra.mxu0 0.0
    %295 = vmatprep.subr.mxu0 0.0
    %296 = vmatpush1.msra.mxu0 0.0
    %297 = vmatprep.mubr.f32.mxu0 0.0
    %298 = vmatmul.mubr.f32.gmra.mrb[0].mxu0 %v231
    %v299 = vpop.f32.mrb[0].mxu0
    %v300 = vadd.f32 %v228, %v299
    %v301 = vpop.f32.mrb[0].mxu0
    %302 = vdwg.mxu0
    %vm303 = vcmask 17408
    %v304 = vsel %vm303, %v300, -inf
    %305 = vmax.xlane.f32.xlu0 %v304
    %v306 = vpop.xlane.xlu0 %305
    %v307 = vsub.f32 %v300, %v306
    %v308 = vmul.f32 %v307, 1.442695
    %v309 = vpow.pop %v308
    %v310 = vsel %vm303, %v309, 0.0
    %311 = vadd.xlane.f32.xlu0 %v310
    %v312 = vpop.xlane.xlu0 %311
    %v313 = vrcp.pop %v312
    %v314 = vmul.f32 %v309, %v313
    %315 = vst.msk [vmem:[#allocation7] sm:$0x3] %vm303, %v314
    // Predicated region
    $region38: #{state_state_to_action_forward.1} parent=1 // pred_check
      _
    $region39: #{state_state_to_action_forward.1} parent=1 // pred_check_branch
      %317 = sbr.rel (0) target = $region41
    $region40: #{state_state_to_action_forward.1} parent=1 // pred_region
      %s319 = ssub.s32 32, 32
      %320 = vsyncadd [#allocation4], %s319
      %s322 = sshll.u32 [#allocation7], 4
      %s323 = int_to_ptr.vmem [resolvable:$true] %s322
      %325 = dma.vmem_to_hbm [thread:$0]  %s323, 32, %s7, [#allocation4]
    $region41: #{state_state_to_action_forward.1} parent=1 // pred_fallthru
      _
    // Predicated region
    $region42: #{state_state_to_action_forward.1} parent=1 // pred_check
      _
    $region43: #{state_state_to_action_forward.1} parent=1 // pred_check_branch
      %327 = sbr.rel (0) target = $region45
    $region44: #{state_state_to_action_forward.1} parent=1 // pred_region
      %328 = dma.done [#allocation4], 32
    $region45: #{state_state_to_action_forward.1} parent=1 // pred_fallthru
      _
    %329 = vsyncpa [#allocation3], 1
    %330 = vsyncpa [#allocation6], 1
    %331 = vsyncpa [#allocation4], 1

</llo_original>
